<compile_context>
chip_gen: v7x
topology: tpu7x:2x2x1
jax: 0.10.0
libtpu: 0.0.40
codegen_flags: <defaults>
</compile_context>

<pallas_src>
import functools

import jax
import jax.numpy as jnp
from jax import lax
from jax.experimental import pallas as pl
from jax.experimental.pallas import tpu as pltpu

LANES = 128


def _round_up(a, b):
    return ((a + b - 1) // b) * b


def _pow_one_minus(pt, gamma):
    """(1 - pt) ** gamma, specialized to a multiply chain for small integer gamma."""
    q = 1.0 - pt
    g = float(gamma)
    if g.is_integer() and 0 <= int(g) <= 4:
        gi = int(g)
        if gi == 0:
            return jnp.ones_like(q)
        r = q
        for _ in range(gi - 1):
            r = r * q
        return r
    return jnp.power(q, g)


def _focal_loss_kernel(logit_ref, target_ref, out_ref, *,
                       gamma, cw0, cw1, n_valid, block_rows):
    """Per-tile focal loss; accumulates per-lane partial sums into the resident output block."""
    c = pl.program_id(0)          # parallel axis (TensorCore shard)
    i = pl.program_id(1)          # arbitrary (reduction) axis

    @pl.when(i == 0)
    def _init():
        out_ref[...] = jnp.zeros_like(out_ref)

    x = logit_ref[...].astype(jnp.float32)            # (block_rows, 128) logits
    tgt = target_ref[...].astype(jnp.float32)         # int8 targets -> f32 {0., 1.}
    is_pos = tgt > 0.5

    p = jax.nn.sigmoid(x)                             # prob of class 1
    pt = jnp.where(is_pos, p, 1.0 - p)                # (prob * one_hot(target)).sum(1)
    pt = jnp.clip(pt, 1e-8, 1.0 - 1e-8)

    # class-weight gather; negate folded into the weight so loss is a pure mul chain.
    if cw0 == cw1:
        neg_w = jnp.float32(-cw0)                     # scalar broadcast, no select
    else:
        neg_w = jnp.where(is_pos, jnp.float32(-cw1), jnp.float32(-cw0))

    loss = neg_w * _pow_one_minus(pt, gamma) * jnp.log(pt)   # (block_rows, 128)

    block_elems = block_rows * LANES
    tile_idx = c * pl.num_programs(1) + i
    rem = n_valid - tile_idx * block_elems            # valid elements in this tile

    @pl.when(rem >= block_elems)                      # common case: fully valid tile
    def _full():
        out_ref[...] += loss[None, :, :]

    @pl.when(rem < block_elems)                       # boundary / all-padding tile
    def _partial():
        row = lax.broadcasted_iota(jnp.int32, (block_rows, LANES), 0)
        lane = lax.broadcasted_iota(jnp.int32, (block_rows, LANES), 1)
        valid = (row * LANES + lane) < rem
        out_ref[...] += jnp.where(valid, loss, 0.0)[None, :, :]


def focal_loss_2d_sigmoid(logit, target, class_weight=None, gamma=2.0,
                          block_rows=1024, num_cores=2):
    """FocalLoss2d1.forward(logit, target, type='sigmoid') with size_average=True."""
    if class_weight is None:
        class_weight = (1.0, 1.0)
    n = int(logit.size)

    x = logit.reshape(-1)
    if not jnp.issubdtype(x.dtype, jnp.floating):
        x = x.astype(jnp.float32)
    t = target.reshape(-1).astype(jnp.int8)           # 1 B/elem HBM traffic for targets

    total_rows = -(-n // LANES)
    block_rows = min(block_rows, _round_up(total_rows, 32))   # int8 min tile is (32, 128)
    tiles = -(-total_rows // block_rows)
    tiles = _round_up(tiles, num_cores)
    rows_padded = tiles * block_rows
    n_padded = rows_padded * LANES

    pad = n_padded - n
    if pad:
        x = jnp.pad(x, (0, pad))                      # pad value irrelevant (index mask)
        t = jnp.pad(t, (0, pad))
    x2 = x.reshape(rows_padded, LANES)
    t2 = t.reshape(rows_padded, LANES)

    tiles_per_core = tiles // num_cores

    kernel = functools.partial(
        _focal_loss_kernel,
        gamma=float(gamma),
        cw0=float(class_weight[0]),
        cw1=float(class_weight[1]),
        n_valid=n,
        block_rows=block_rows,
    )

    partial_sums = pl.pallas_call(
        kernel,
        out_shape=jax.ShapeDtypeStruct((num_cores, block_rows, LANES), jnp.float32),
        grid_spec=pltpu.PrefetchScalarGridSpec(
            num_scalar_prefetch=0,
            grid=(num_cores, tiles_per_core),
            in_specs=[
                pl.BlockSpec((block_rows, LANES),
                             lambda c, i: (c * tiles_per_core + i, 0)),   # logits
                pl.BlockSpec((block_rows, LANES),
                             lambda c, i: (c * tiles_per_core + i, 0)),   # int8 targets
            ],
            out_specs=pl.BlockSpec((1, block_rows, LANES), lambda c, i: (c, 0, 0)),
        ),
        compiler_params=pltpu.CompilerParams(
            dimension_semantics=("parallel", "arbitrary"),
            vmem_limit_bytes=32 * 1024 * 1024,
        ),
    )(x2, t2)

    # single tiny cross-lane reduction + mean, done by XLA outside the hot loop.
    return jnp.sum(partial_sums) * jnp.float32(1.0 / n)


def _reference(logit, target, class_weight=(1.0, 1.0), gamma=2.0):
    """Pure-JAX reference mirroring the PyTorch forward."""
    p = jax.nn.sigmoid(logit.reshape(-1).astype(jnp.float32))
    t = target.reshape(-1).astype(jnp.int32)
    pt = jnp.where(t == 1, p, 1.0 - p)
    pt = jnp.clip(pt, 1e-8, 1.0 - 1e-8)
    cw = jnp.asarray(class_weight, jnp.float32)[t]
    return jnp.mean(-cw * (1.0 - pt) ** gamma * jnp.log(pt))


if __name__ == "__main__":
    key = jax.random.PRNGKey(0)
    k1, k2 = jax.random.split(key)

    # layout: logits NCHW (B=2, C=4, H=16, W=16); binary targets of same numel.
    logit = jax.random.normal(k1, (2, 4, 16, 16), dtype=jnp.float32)
    target = jax.random.bernoulli(k2, p=0.5, shape=(2, 4, 16, 16)).astype(jnp.int32)

    loss = focal_loss_2d_sigmoid(logit, target, class_weight=(1.0, 1.0), gamma=2.0)
    loss = jax.block_until_ready(loss)

    ref = _reference(logit, target)
    assert jnp.allclose(loss, ref, rtol=1e-5, atol=1e-6), (loss, ref)

    # TODO(synk): the 'softmax' branch and size_average=False (per-element loss output)
    # are not exercised by the default forward and are not implemented.
    print("KERNEL_OK")
</pallas_src>

<mosaic_0001>
module attributes {stable_mosaic.version = 11 : i64} {
  func.func @_focal_loss_kernel(%arg0: i32, %arg1: i32, %arg2: memref<32x128xf32, #tpu.memory_space<vmem>>, %arg3: memref<32x128xi8, #tpu.memory_space<vmem>>, %arg4: memref<1x32x128xf32, #tpu.memory_space<vmem>>) attributes {dimension_semantics = [#tpu.dimension_semantics<parallel>, #tpu.dimension_semantics<arbitrary>], iteration_bounds = array<i64: 2, 1>, scalar_prefetch = 0 : i64, scratch_operands = 0 : i64, tpu.core_type = #tpu.core_type<tc>, window_params = [{transform_indices = @transform_0, window_bounds = array<i64: 32, 128>}, {transform_indices = @transform_1, window_bounds = array<i64: 32, 128>}, {transform_indices = @transform_2, window_bounds = array<i64: 1, 32, 128>}]} {
    %c0_i32 = arith.constant 0 : i32
    %0 = arith.cmpi eq, %arg1, %c0_i32 : i32
    %1 = arith.extui %0 : i1 to i32
    %c0_i32_0 = arith.constant 0 : i32
    %2 = arith.cmpi ne, %1, %c0_i32_0 : i32
    scf.if %2 {
      %cst_14 = arith.constant 0.000000e+00 : f32
      %37 = vector.broadcast %cst_14 : f32 to vector<1x32x128xf32>
      %c0_15 = arith.constant 0 : index
      %c0_16 = arith.constant 0 : index
      %c0_17 = arith.constant 0 : index
      %38 = vector.load %arg4[%c0_15, %c0_16, %c0_17] : memref<1x32x128xf32, #tpu.memory_space<vmem>>, vector<1x32x128xf32>
      tpu.vector_store %arg4[%c0_15, %c0_16, %c0_17], %37 {strides = array<i32>} : memref<1x32x128xf32, #tpu.memory_space<vmem>>, vector<1x32x128xf32>,
    } else {
    }
    %c0 = arith.constant 0 : index
    %c0_1 = arith.constant 0 : index
    %3 = vector.load %arg2[%c0, %c0_1] : memref<32x128xf32, #tpu.memory_space<vmem>>, vector<32x128xf32>
    %c0_2 = arith.constant 0 : index
    %c0_3 = arith.constant 0 : index
    %4 = vector.load %arg3[%c0_2, %c0_3] : memref<32x128xi8, #tpu.memory_space<vmem>>, vector<32x128xi8>
    %5 = arith.sitofp %4 : vector<32x128xi8> to vector<32x128xf32>
    %cst = arith.constant 5.000000e-01 : f32
    %6 = vector.broadcast %cst : f32 to vector<32x128xf32>
    %7 = arith.cmpf ogt, %5, %6 : vector<32x128xf32>
    %8 = arith.negf %3 : vector<32x128xf32>
    %9 = math.exp %8 : vector<32x128xf32>
    %cst_4 = arith.constant 1.000000e+00 : f32
    %10 = vector.broadcast %cst_4 : f32 to vector<32x128xf32>
    %11 = arith.addf %10, %9 : vector<32x128xf32>
    %12 = arith.divf %10, %11 : vector<32x128xf32>
    %cst_5 = arith.constant 1.000000e+00 : f32
    %13 = vector.broadcast %cst_5 : f32 to vector<32x128xf32>
    %14 = arith.subf %13, %12 : vector<32x128xf32>
    %15 = arith.select %7, %12, %14 : vector<32x128xi1>, vector<32x128xf32>
    %cst_6 = arith.constant 9.99999993E-9 : f32
    %cst_7 = arith.constant 1.000000e+00 : f32
    %16 = vector.broadcast %cst_6 : f32 to vector<32x128xf32>
    %17 = arith.maximumf %16, %15 : vector<32x128xf32>
    %18 = vector.broadcast %cst_7 : f32 to vector<32x128xf32>
    %19 = arith.minimumf %18, %17 : vector<32x128xf32>
    %cst_8 = arith.constant 1.000000e+00 : f32
    %20 = vector.broadcast %cst_8 : f32 to vector<32x128xf32>
    %21 = arith.subf %20, %19 : vector<32x128xf32>
    %22 = arith.mulf %21, %21 : vector<32x128xf32>
    %cst_9 = arith.constant -1.000000e+00 : f32
    %23 = vector.broadcast %cst_9 : f32 to vector<32x128xf32>
    %24 = arith.mulf %23, %22 : vector<32x128xf32>
    %25 = math.log %19 : vector<32x128xf32>
    %26 = arith.mulf %24, %25 : vector<32x128xf32>
    %c1_i32 = arith.constant 1 : i32
    %27 = arith.muli %arg0, %c1_i32 : i32
    %28 = arith.addi %27, %arg1 : i32
    %c4096_i32 = arith.constant 4096 : i32
    %29 = arith.muli %28, %c4096_i32 : i32
    %c2048_i32 = arith.constant 2048 : i32
    %30 = arith.subi %c2048_i32, %29 : i32
    %c4096_i32_10 = arith.constant 4096 : i32
    %31 = arith.cmpi sge, %30, %c4096_i32_10 : i32
    %32 = arith.extui %31 : i1 to i32
    %c0_i32_11 = arith.constant 0 : i32
    %33 = arith.cmpi ne, %32, %c0_i32_11 : i32
    scf.if %33 {
      %c0_14 = arith.constant 0 : index
      %c0_15 = arith.constant 0 : index
      %c0_16 = arith.constant 0 : index
      %37 = vector.load %arg4[%c0_14, %c0_15, %c0_16] : memref<1x32x128xf32, #tpu.memory_space<vmem>>, vector<1x32x128xf32>
      %38 = vector.shape_cast %26 : vector<32x128xf32> to vector<1x32x128xf32>
      %39 = arith.addf %37, %38 : vector<1x32x128xf32>
      %c0_17 = arith.constant 0 : index
      %c0_18 = arith.constant 0 : index
      %c0_19 = arith.constant 0 : index
      %40 = vector.load %arg4[%c0_17, %c0_18, %c0_19] : memref<1x32x128xf32, #tpu.memory_space<vmem>>, vector<1x32x128xf32>
      tpu.vector_store %arg4[%c0_17, %c0_18, %c0_19], %39 {strides = array<i32>} : memref<1x32x128xf32, #tpu.memory_space<vmem>>, vector<1x32x128xf32>,
    } else {
    }
    %c4096_i32_12 = arith.constant 4096 : i32
    %34 = arith.cmpi slt, %30, %c4096_i32_12 : i32
    %35 = arith.extui %34 : i1 to i32
    %c0_i32_13 = arith.constant 0 : i32
    %36 = arith.cmpi ne, %35, %c0_i32_13 : i32
    scf.if %36 {
      %37 = tpu.iota {dimensions = array<i32: 0>} : vector<32x128xi32>
      %38 = tpu.iota {dimensions = array<i32: 1>} : vector<32x128xi32>
      %c128_i32 = arith.constant 128 : i32
      %39 = vector.broadcast %c128_i32 : i32 to vector<32x128xi32>
      %40 = arith.muli %37, %39 : vector<32x128xi32>
      %41 = arith.addi %40, %38 : vector<32x128xi32>
      %42 = vector.broadcast %30 : i32 to vector<32x128xi32>
      %43 = arith.cmpi slt, %41, %42 : vector<32x128xi32>
      %c0_14 = arith.constant 0 : index
      %c0_15 = arith.constant 0 : index
      %c0_16 = arith.constant 0 : index
      %44 = vector.load %arg4[%c0_14, %c0_15, %c0_16] : memref<1x32x128xf32, #tpu.memory_space<vmem>>, vector<1x32x128xf32>
      %cst_17 = arith.constant 0.000000e+00 : f32
      %45 = vector.broadcast %cst_17 : f32 to vector<32x128xf32>
      %46 = arith.select %43, %26, %45 : vector<32x128xi1>, vector<32x128xf32>
      %47 = vector.shape_cast %46 : vector<32x128xf32> to vector<1x32x128xf32>
      %48 = arith.addf %44, %47 : vector<1x32x128xf32>
      %c0_18 = arith.constant 0 : index
      %c0_19 = arith.constant 0 : index
      %c0_20 = arith.constant 0 : index
      %49 = vector.load %arg4[%c0_18, %c0_19, %c0_20] : memref<1x32x128xf32, #tpu.memory_space<vmem>>, vector<1x32x128xf32>
      tpu.vector_store %arg4[%c0_18, %c0_19, %c0_20], %48 {strides = array<i32>} : memref<1x32x128xf32, #tpu.memory_space<vmem>>, vector<1x32x128xf32>,
    } else {
    }
    return
  }
  func.func @transform_0(%arg0: i32, %arg1: i32) -> (i32, i32) {
    %c1_i32 = arith.constant 1 : i32
    %0 = arith.muli %arg0, %c1_i32 : i32
    %1 = arith.addi %0, %arg1 : i32
    %c0_i32 = arith.constant 0 : i32
    %c0_i32_0 = arith.constant 0 : i32
    return %1, %c0_i32 : i32, i32
  }
  func.func @transform_1(%arg0: i32, %arg1: i32) -> (i32, i32) {
    %c1_i32 = arith.constant 1 : i32
    %0 = arith.muli %arg0, %c1_i32 : i32
    %1 = arith.addi %0, %arg1 : i32
    %c0_i32 = arith.constant 0 : i32
    %c0_i32_0 = arith.constant 0 : i32
    return %1, %c0_i32 : i32, i32
  }
  func.func @transform_2(%arg0: i32, %arg1: i32) -> (i32, i32, i32) {
    %c0_i32 = arith.constant 0 : i32
    %c0_i32_0 = arith.constant 0 : i32
    %c0_i32_1 = arith.constant 0 : i32
    return %arg0, %c0_i32, %c0_i32_0 : i32, i32, i32
  }
}

</mosaic_0001>

<llo_original>
// kernel: tpu_custom_call.1
$region0: #{tpu_custom_call.1}
  #allocation0 [shape = 'u32[]', space=smem, size = 0x4, offset = 0x4, fixed_abs, tag = 'smem constant byte address 0x4 - core index']
  #allocation1 [shape = 'u32[144,128]{1,0:T(1,128)}', space=vmem, size = 0x12000, scoped, tag = 'internal scratch']
  %s0 = inlined_call_operand.hbm [shape: f32[64,128], index: 0, kind: input, shape index: {}]
  %s1 = inlined_call_operand.hbm [shape: s8[64,128], index: 1, kind: input, shape index: {}]
  %s2 = inlined_call_operand.hbm [shape: f32[2,32,128], index: 2, kind: output, shape index: {}]
  %s3 = sld [smem:[#allocation0]]
  $region61: #{tpu_custom_call.1} parent=0
    _
  %s5 = ssub.s32 1, %s3
  %s6 = scalar_select 0, %s5, %s3
  $region1: #{tpu_custom_call.1} parent=0
    #allocation2 [shape = 'u8[32768]{0}', space=vmem, size = 0x8000, scoped, tag = 'input window, operand 0']
    #allocation3 [shape = 's32[2]{0}', space=sflag, size = 0x8, scoped, tag = 'scoped memory for tpu_custom_call.1']
    #allocation4 [shape = 's32[2]{0}', space=sflag, size = 0x8, scoped, tag = 'scoped memory for tpu_custom_call.1']
    #allocation5 [shape = 'u8[8192]{0}', space=vmem, size = 0x2000, scoped, tag = 'input window, operand 1']
    #allocation6 [shape = 's32[2]{0}', space=sflag, size = 0x8, scoped, tag = 'scoped memory for tpu_custom_call.1']
    #allocation7 [shape = 'u8[32768]{0}', space=vmem, size = 0x8000, scoped, tag = 'output window, operand 0']
    %7 = vsyncpa [#allocation3], 0
    %s8 = scalar_lea.sflag [#allocation3], 1
    %9 = vsyncpa %s8, 0
    %10 = vsyncpa [#allocation6], 0
    %s11 = scalar_lea.sflag [#allocation6], 1
    %12 = vsyncpa %s11, 0
    %13 = vsyncpa [#allocation4], 0
    %s14 = scalar_lea.sflag [#allocation4], 1
    %15 = vsyncpa %s14, 0
    loop: start=0, step=1, limit=4
    $region2: #{tpu_custom_call.1} parent=1 // loop_pre_header
      _
    $region3: #{tpu_custom_call.1} parent=1 // loop_header
      %s17 = sphi 0, %s21
      %p18 = scmp.ge.s32.totalorder %s17, 4
      %s24 = sphi 0, %s36
      %s25 = sphi 0, %s32
      %s26 = sphi 0, %s24
      %s27 = sphi 0, %s25
      %s28 = sphi 0, %s26
      %s29 = sphi 0, %s27
      %s41 = sphi 0, %s43
      %s44 = sphi 0, %s41
      %s45 = sphi 0, %s44
      %s61 = sphi 0, %s45
      %s69 = sphi 0, %s71
      %s72 = sphi 0, %s69
      %s73 = sphi 0, %s72
      %s89 = sphi 0, %s73
      %s95 = sphi 0, %s97
      %s98 = sphi 0, %s95
      %s99 = sphi 0, %s98
      %s115 = sphi 0, %s99
    $region4: #{tpu_custom_call.1} parent=1 // loop_header_branch
      %20 = sbr.rel (%p18) target = $region8
    $region5: #{tpu_custom_call.1} parent=1 // loop_body
      %s22 = ssub.s32 %s17, 1
      %s23 = ssub.s32 %s17, 2
      %s30 = sadd.s32 1, %s25
      %p31 = scmp.ge.s32.totalorder %s30, 1
      %s32 = scalar_select %p31, 0, %s30
      %s33 = sadd.s32 1, %s24
      %s34 = scalar_select %p31, %s33, %s24
      %p35 = scmp.ge.s32.totalorder %s34, 2
      %s36 = scalar_select %p35, 0, %s34
      %s37 = sadd.s32 %s24, %s25
      %s38 = sadd.s32 %s36, %s32
      %s39 = ssub.s32 %s37, %s38
      %p40 = scmp.eq.s32.totalorder %s39, 0
      %s42 = sadd.s32 %s41, 1
      %s43 = scalar_select %p40, %s41, %s42
      %p46 = pneg %p40
      %p47 = scmp.eq.s32.totalorder %s17, 1
      %p48 = por %p46, %p47
      %p49 = scmp.ne.s32.totalorder %s41, %s44
      %p50 = scmp.eq.s32.totalorder %s17, 0
      %p51 = por %p49, %p50
      %p52 = scmp.ne.s32.totalorder %s41, %s44
      %p53 = scmp.eq.s32.totalorder %s22, 1
      %p54 = por %p52, %p53
      %p55 = scmp.ne.s32.totalorder %s44, %s45
      %p56 = scmp.eq.s32.totalorder %s22, 0
      %p57 = por %p55, %p56
      %p58 = scmp.ne.s32.totalorder %s44, %s45
      %p59 = scmp.eq.s32.totalorder %s23, 1
      %p60 = por %p58, %p59
      %p62 = scmp.ne.s32.totalorder %s45, %s61
      %p63 = scmp.eq.s32.totalorder %s23, 0
      %p64 = por %p62, %p63
      %s65 = sadd.s32 %s24, %s25
      %s66 = sadd.s32 %s36, %s32
      %s67 = ssub.s32 %s65, %s66
      %p68 = scmp.eq.s32.totalorder %s67, 0
      %s70 = sadd.s32 %s69, 1
      %s71 = scalar_select %p68, %s69, %s70
      %p74 = pneg %p68
      %p75 = scmp.eq.s32.totalorder %s17, 1
      %p76 = por %p74, %p75
      %p77 = scmp.ne.s32.totalorder %s69, %s72
      %p78 = scmp.eq.s32.totalorder %s17, 0
      %p79 = por %p77, %p78
      %p80 = scmp.ne.s32.totalorder %s69, %s72
      %p81 = scmp.eq.s32.totalorder %s22, 1
      %p82 = por %p80, %p81
      %p83 = scmp.ne.s32.totalorder %s72, %s73
      %p84 = scmp.eq.s32.totalorder %s22, 0
      %p85 = por %p83, %p84
      %p86 = scmp.ne.s32.totalorder %s72, %s73
      %p87 = scmp.eq.s32.totalorder %s23, 1
      %p88 = por %p86, %p87
      %p90 = scmp.ne.s32.totalorder %s73, %s89
      %p91 = scmp.eq.s32.totalorder %s23, 0
      %p92 = por %p90, %p91
      %s93 = ssub.s32 %s24, %s36
      %p94 = scmp.eq.s32.totalorder %s93, 0
      %s96 = sadd.s32 %s95, 1
      %s97 = scalar_select %p94, %s95, %s96
      %p100 = pneg %p94
      %p101 = scmp.eq.s32.totalorder %s17, 1
      %p102 = por %p100, %p101
      %p103 = scmp.ne.s32.totalorder %s95, %s98
      %p104 = scmp.eq.s32.totalorder %s17, 0
      %p105 = por %p103, %p104
      %p106 = scmp.ne.s32.totalorder %s95, %s98
      %p107 = scmp.eq.s32.totalorder %s22, 1
      %p108 = por %p106, %p107
      %p109 = scmp.ne.s32.totalorder %s98, %s99
      %p110 = scmp.eq.s32.totalorder %s22, 0
      %p111 = por %p109, %p110
      %p112 = scmp.ne.s32.totalorder %s98, %s99
      %p113 = scmp.eq.s32.totalorder %s23, 1
      %p114 = por %p112, %p113
      %p116 = scmp.ne.s32.totalorder %s99, %s115
      %p117 = scmp.eq.s32.totalorder %s23, 0
      %p118 = por %p116, %p117
      %p119 = scmp.le.s32.totalorder 1, %s17
      %p120 = scmp.lt.s32.totalorder %s17, 3
      %p121 = pnand %p119, %p120
      %p122 = pneg %p121
      // Predicated region
      $region9: #{tpu_custom_call.1} parent=5 // pred_check
        _
      $region10: #{tpu_custom_call.1} parent=5 // pred_check_branch
        %124 = sbr.rel (%p121) target = $region12
      $region11: #{tpu_custom_call.1} parent=5 // pred_region
        %s125 = ssub.s32 %s17, 1
      $region12: #{tpu_custom_call.1} parent=5 // pred_fallthru
        _
      %p126 = scmp.lt.s32.totalorder %s17, 2
      // Predicated region
      $region13: #{tpu_custom_call.1} parent=5 // pred_check
        %p127 = pneg %p126
      $region14: #{tpu_custom_call.1} parent=5 // pred_check_branch
        %129 = sbr.rel (%p127) target = $region16
      $region15: #{tpu_custom_call.1} parent=5 // pred_region
        // Predicated region
        $region17: #{tpu_custom_call.1} parent=15 // pred_check
          %p130 = pneg %p51
        $region18: #{tpu_custom_call.1} parent=15 // pred_check_branch
          %132 = sbr.rel (%p130) target = $region20
        $region19: #{tpu_custom_call.1} parent=15 // pred_region
          %s133 = sand.u32 %s41, 1
          %s134 = scalar_lea.sflag [#allocation3], %s133
          %s135 = sand.u32 %s41, 1
          %s136 = smul.addr %s135, 32
          %s137 = scalar_lea.vmem [#allocation2], %s136
          %s138 = sadd.s32 %s24, %s25
          %s139 = smul.u32 4, %s138
          %s141 = ssub.s32 512, 512
          %142 = vsyncadd %s134, %s141
          %s143 = smul.addr %s139, 128
          %s144 = scalar_lea.hbm %s0, %s143
          %s145 = sshll.u32 %s137, 4
          %s146 = int_to_ptr.vmem [resolvable:$true] %s145
          %151 = dma.hbm_to_vmem [thread:$0]  %s144, 512, %s146, %s134, 128, 128, 8
        $region20: #{tpu_custom_call.1} parent=15 // pred_fallthru
          _
        // Predicated region
        $region21: #{tpu_custom_call.1} parent=15 // pred_check
          %p152 = pneg %p79
        $region22: #{tpu_custom_call.1} parent=15 // pred_check_branch
          %154 = sbr.rel (%p152) target = $region24
        $region23: #{tpu_custom_call.1} parent=15 // pred_region
          %s155 = sand.u32 %s69, 1
          %s156 = scalar_lea.sflag [#allocation6], %s155
          %s157 = sand.u32 %s69, 1
          %s158 = smul.addr %s157, 8
          %s159 = scalar_lea.vmem [#allocation5], %s158
          %s160 = sadd.s32 %s24, %s25
          %s162 = ssub.s32 128, 128
          %163 = vsyncadd %s156, %s162
          %s164 = smul.addr %s160, 128
          %s165 = scalar_lea.hbm %s1, %s164
          %s167 = sshll.u32 %s159, 4
          %s168 = int_to_ptr.vmem [resolvable:$true] %s167
          %170 = dma.hbm_to_vmem [thread:$0]  %s165, 128, %s168, %s156
        $region24: #{tpu_custom_call.1} parent=15 // pred_fallthru
          _
      $region16: #{tpu_custom_call.1} parent=5 // pred_fallthru
        _
      %p171 = scmp.le.s32.totalorder 1, %s17
      %p172 = scmp.lt.s32.totalorder %s17, 3
      %p173 = pnand %p171, %p172
      %p174 = pneg %p173
      // Predicated region
      $region25: #{tpu_custom_call.1} parent=5 // pred_check
        _
      $region26: #{tpu_custom_call.1} parent=5 // pred_check_branch
        %176 = sbr.rel (%p173) target = $region28
      $region27: #{tpu_custom_call.1} parent=5 // pred_region
        %s177 = ssub.s32 %s17, 1
        %s178 = sand.u32 %s44, 1
        %s179 = scalar_lea.sflag [#allocation3], %s178
        %s180 = sand.u32 %s44, 1
        %s181 = smul.addr %s180, 32
        %s182 = scalar_lea.vmem [#allocation2], %s181
        // Predicated region
        $region29: #{tpu_custom_call.1} parent=27 // pred_check
          %p183 = pneg %p57
        $region30: #{tpu_custom_call.1} parent=27 // pred_check_branch
          %185 = sbr.rel (%p183) target = $region32
        $region31: #{tpu_custom_call.1} parent=27 // pred_region
          %186 = dma.done %s179, 512
        $region32: #{tpu_custom_call.1} parent=27 // pred_fallthru
          _
        %s187 = sand.u32 %s72, 1
        %s188 = scalar_lea.sflag [#allocation6], %s187
        %s189 = sand.u32 %s72, 1
        %s190 = smul.addr %s189, 8
        %s191 = scalar_lea.vmem [#allocation5], %s190
        // Predicated region
        $region33: #{tpu_custom_call.1} parent=27 // pred_check
          %p192 = pneg %p85
        $region34: #{tpu_custom_call.1} parent=27 // pred_check_branch
          %194 = sbr.rel (%p192) target = $region36
        $region35: #{tpu_custom_call.1} parent=27 // pred_region
          %195 = dma.done %s188, 128
        $region36: #{tpu_custom_call.1} parent=27 // pred_fallthru
          _
        %s196 = sand.u32 %s44, 1
        %s197 = scalar_lea.sflag [#allocation3], %s196
        %s198 = sand.u32 %s44, 1
        %s199 = smul.addr %s198, 32
        %s200 = scalar_lea.vmem [#allocation2], %s199
        %p201 = pneg %p57
        %p202 = pneg %p54
        %s203 = sand.u32 %s72, 1
        %s204 = scalar_lea.sflag [#allocation6], %s203
        %s205 = sand.u32 %s72, 1
        %s206 = smul.addr %s205, 8
        %s207 = scalar_lea.vmem [#allocation5], %s206
        %p208 = pneg %p85
        %p209 = pneg %p82
        %p210 = pneg %p111
        %p211 = pneg %p108
        %s212 = sand.u32 %s98, 1
        %s213 = scalar_lea.sflag [#allocation4], %s212
        %s214 = sand.u32 %s98, 1
        %s215 = smul.addr %s214, 32
        %s216 = scalar_lea.vmem [#allocation7], %s215
        %s217 = sadd.s32 %s26, %s27
        %s218 = smul.u32 4, %s217
        %s219 = sadd.s32 %s26, %s27
        %p220 = scmp.eq.s32.totalorder %s27, 0
        // Predicated region
        $region37: #{tpu_custom_call.1} parent=27 // pred_check
          %p221 = pneg %p220
        $region38: #{tpu_custom_call.1} parent=27 // pred_check_branch
          %223 = sbr.rel (%p221) target = $region40
        $region39: #{tpu_custom_call.1} parent=27 // pred_region
          %224 = vst [vmem:[%s216] sm:$0xff] 0.0
          %225 = vst [vmem:[%s216 + $0x8] sm:$0xff] 0.0
          %226 = vst [vmem:[%s216 + $0x10] sm:$0xff] 0.0
          %227 = vst [vmem:[%s216 + $0x18] sm:$0xff] 0.0
        $region40: #{tpu_custom_call.1} parent=27 // pred_fallthru
          _
        %v228 = vld [vmem:[%s182] sm:$0xff]
        %v229 = vld [vmem:[%s182 + $0x8] sm:$0xff]
        %v230 = vld [vmem:[%s182 + $0x10] sm:$0xff]
        %v231 = vld [vmem:[%s182 + $0x18] sm:$0xff]
        %v232 = vld [vmem:[%s191] sm:$0xff]
        %v233 = vunpack.c.0.s8 %v232
        %v234 = vunpack.c.1.s8 %v232
        %v235 = vunpack.c.2.s8 %v232
        %v236 = vunpack.c.3.s8 %v232
        %v237 = vcvt.s32.f32 %v233
        %v238 = vcvt.s32.f32 %v234
        %v239 = vcvt.s32.f32 %v235
        %v240 = vcvt.s32.f32 %v236
        %vm241 = vcmp.gt.f32.partialorder %v237, 0.5
        %vm242 = vcmp.gt.f32.partialorder %v238, 0.5
        %vm243 = vcmp.gt.f32.partialorder %v239, 0.5
        %vm244 = vcmp.gt.f32.partialorder %v240, 0.5
        %v245 = vxor.u32 %v228, 2147483648
        %v246 = vxor.u32 %v229, 2147483648
        %v247 = vxor.u32 %v230, 2147483648
        %v248 = vxor.u32 %v231, 2147483648
        %v249 = vmul.f32 %v245, 1.442695
        %v250 = vpow.pop %v249
        %v251 = vmul.f32 %v246, 1.442695
        %v252 = vpow.pop %v251
        %v253 = vmul.f32 %v247, 1.442695
        %v254 = vpow.pop %v253
        %v255 = vmul.f32 %v248, 1.442695
        %v256 = vpow.pop %v255
        %v257 = vadd.f32 %v250, 1.0
        %v258 = vadd.f32 %v252, 1.0
        %v259 = vadd.f32 %v254, 1.0
        %v260 = vadd.f32 %v256, 1.0
        %v261 = vrcp.pop %v257
        %v262 = vmul.f32 1.0, %v261
        %v263 = vrcp.pop %v258
        %v264 = vmul.f32 1.0, %v263
        %v265 = vrcp.pop %v259
        %v266 = vmul.f32 1.0, %v265
        %v267 = vrcp.pop %v260
        %v268 = vmul.f32 1.0, %v267
        %v269 = vsub.f32 1.0, %v262
        %v270 = vsub.f32 1.0, %v264
        %v271 = vsub.f32 1.0, %v266
        %v272 = vsub.f32 1.0, %v268
        %v273 = vsel %vm241, %v262, %v269
        %v274 = vsel %vm242, %v264, %v270
        %v275 = vsel %vm243, %v266, %v271
        %v276 = vsel %vm244, %v268, %v272
        %v277 = vmax.f32 %v273, 1e-08
        %v278 = vmax.f32 %v274, 1e-08
        %v279 = vmax.f32 %v275, 1e-08
        %v280 = vmax.f32 %v276, 1e-08
        %v281 = vmin.f32 %v277, 1.0
        %v282 = vmin.f32 %v278, 1.0
        %v283 = vmin.f32 %v279, 1.0
        %v284 = vmin.f32 %v280, 1.0
        %v285 = vsub.f32 1.0, %v281
        %v286 = vsub.f32 1.0, %v282
        %v287 = vsub.f32 1.0, %v283
        %v288 = vsub.f32 1.0, %v284
        %v289 = vmul.f32 %v285, %v285
        %v290 = vmul.f32 %v286, %v286
        %v291 = vmul.f32 %v287, %v287
        %v292 = vmul.f32 %v288, %v288
        %v293 = vmul.f32 %v289, -1.0
        %v294 = vmul.f32 %v290, -1.0
        %v295 = vmul.f32 %v291, -1.0
        %v296 = vmul.f32 %v292, -1.0
        %v297 = vlog2.pop %v281
        %v298 = vmul.f32 %v297, 0.6931472
        %v299 = vlog2.pop %v282
        %v300 = vmul.f32 %v299, 0.6931472
        %v301 = vlog2.pop %v283
        %v302 = vmul.f32 %v301, 0.6931472
        %v303 = vlog2.pop %v284
        %v304 = vmul.f32 %v303, 0.6931472
        %v305 = vmul.f32 %v293, %v298
        %v306 = vmul.f32 %v294, %v300
        %v307 = vmul.f32 %v295, %v302
        %v308 = vmul.f32 %v296, %v304
        %s309 = sadd.s32 %s26, %s27
        %s310 = smul.u32 %s309, 4096
        %s311 = ssub.s32 2048, %s310
        %p312 = scmp.ge.s32.totalorder %s311, 4096
        // Predicated region
        $region41: #{tpu_custom_call.1} parent=27 // pred_check
          %p313 = pneg %p312
        $region42: #{tpu_custom_call.1} parent=27 // pred_check_branch
          %315 = sbr.rel (%p313) target = $region44
        $region43: #{tpu_custom_call.1} parent=27 // pred_region
          %v316 = vld [vmem:[%s216] sm:$0xff]
          %v317 = vld [vmem:[%s216 + $0x8] sm:$0xff]
          %v318 = vld [vmem:[%s216 + $0x10] sm:$0xff]
          %v319 = vld [vmem:[%s216 + $0x18] sm:$0xff]
          %v320 = vadd.f32 %v316, %v305
          %v321 = vadd.f32 %v317, %v306
          %v322 = vadd.f32 %v318, %v307
          %v323 = vadd.f32 %v319, %v308
          %324 = vst [vmem:[%s216] sm:$0xff] %v320
          %325 = vst [vmem:[%s216 + $0x8] sm:$0xff] %v321
          %326 = vst [vmem:[%s216 + $0x10] sm:$0xff] %v322
          %327 = vst [vmem:[%s216 + $0x18] sm:$0xff] %v323
        $region44: #{tpu_custom_call.1} parent=27 // pred_fallthru
          _
        %p328 = scmp.lt.s32.totalorder %s311, 4096
        // Predicated region
        $region45: #{tpu_custom_call.1} parent=27 // pred_check
          %p329 = pneg %p328
        $region46: #{tpu_custom_call.1} parent=27 // pred_check_branch
          %331 = sbr.rel (%p329) target = $region48
        $region47: #{tpu_custom_call.1} parent=27 // pred_region
          %v332 = vlaneseq
          %v333 = vshrl.u32 %v332, 7
          %v334 = vadd.s32 %v333, 8
          %v335 = vadd.s32 %v333, 16
          %v336 = vadd.s32 %v333, 24
          %v337 = vlaneseq
          %v338 = vand.u32 %v337, 127
          %v339 = vmul.u32 %v333, 128
          %v340 = vmul.u32 %v334, 128
          %v341 = vmul.u32 %v335, 128
          %v342 = vmul.u32 %v336, 128
          %v343 = vadd.s32 %v339, %v338
          %v344 = vadd.s32 %v340, %v338
          %v345 = vadd.s32 %v341, %v338
          %v346 = vadd.s32 %v342, %v338
          %v347 = vstv %s311
          %vm348 = vcmp.lt.s32.totalorder %v343, %v347
          %vm349 = vcmp.lt.s32.totalorder %v344, %v347
          %vm350 = vcmp.lt.s32.totalorder %v345, %v347
          %vm351 = vcmp.lt.s32.totalorder %v346, %v347
          %v352 = vld [vmem:[%s216] sm:$0xff]
          %v353 = vld [vmem:[%s216 + $0x8] sm:$0xff]
          %v354 = vld [vmem:[%s216 + $0x10] sm:$0xff]
          %v355 = vld [vmem:[%s216 + $0x18] sm:$0xff]
          %v356 = vsel %vm348, %v305, 0.0
          %v357 = vsel %vm349, %v306, 0.0
          %v358 = vsel %vm350, %v307, 0.0
          %v359 = vsel %vm351, %v308, 0.0
          %v360 = vadd.f32 %v352, %v356
          %v361 = vadd.f32 %v353, %v357
          %v362 = vadd.f32 %v354, %v358
          %v363 = vadd.f32 %v355, %v359
          %364 = vst [vmem:[%s216] sm:$0xff] %v360
          %365 = vst [vmem:[%s216 + $0x8] sm:$0xff] %v361
          %366 = vst [vmem:[%s216 + $0x10] sm:$0xff] %v362
          %367 = vst [vmem:[%s216 + $0x18] sm:$0xff] %v363
        $region48: #{tpu_custom_call.1} parent=27 // pred_fallthru
          _
        %s368 = sand.u32 %s98, 1
        %s369 = scalar_lea.sflag [#allocation4], %s368
        %s370 = sand.u32 %s98, 1
        %s371 = smul.addr %s370, 32
        %s372 = scalar_lea.vmem [#allocation7], %s371
        // Predicated region
        $region49: #{tpu_custom_call.1} parent=27 // pred_check
          %p373 = pneg %p108
        $region50: #{tpu_custom_call.1} parent=27 // pred_check_branch
          %375 = sbr.rel (%p373) target = $region52
        $region51: #{tpu_custom_call.1} parent=27 // pred_region
          %s377 = ssub.s32 512, 512
          %378 = vsyncadd %s369, %s377
          %s379 = smul.addr %s26, 4
          %s380 = smul.addr %s379, 128
          %s381 = scalar_lea.hbm %s2, %s380
          %s382 = sshll.u32 %s372, 4
          %s383 = int_to_ptr.vmem [resolvable:$true] %s382
          %388 = dma.vmem_to_hbm [thread:$0]  %s383, 512, %s381, %s369, 128, 128, 8
        $region52: #{tpu_custom_call.1} parent=27 // pred_fallthru
          _
      $region28: #{tpu_custom_call.1} parent=5 // pred_fallthru
        _
      %p389 = scmp.le.s32.totalorder 2, %s17
      // Predicated region
      $region53: #{tpu_custom_call.1} parent=5 // pred_check
        %p390 = pneg %p389
      $region54: #{tpu_custom_call.1} parent=5 // pred_check_branch
        %392 = sbr.rel (%p390) target = $region56
      $region55: #{tpu_custom_call.1} parent=5 // pred_region
        %s393 = ssub.s32 %s17, 2
        // Predicated region
        $region57: #{tpu_custom_call.1} parent=55 // pred_check
          %p394 = pneg %p114
        $region58: #{tpu_custom_call.1} parent=55 // pred_check_branch
          %396 = sbr.rel (%p394) target = $region60
        $region59: #{tpu_custom_call.1} parent=55 // pred_region
          %s397 = sand.u32 %s99, 1
          %s398 = scalar_lea.sflag [#allocation4], %s397
          %s399 = sand.u32 %s99, 1
          %s400 = smul.addr %s399, 32
          %s401 = scalar_lea.vmem [#allocation7], %s400
          %402 = dma.done %s398, 512
        $region60: #{tpu_custom_call.1} parent=55 // pred_fallthru
          _
      $region56: #{tpu_custom_call.1} parent=5 // pred_fallthru
        _
    $region6: #{tpu_custom_call.1} parent=1 // loop_footer
      %s21 = sadd.s32 1, %s17
    $region7: #{tpu_custom_call.1} parent=1 // loop_footer_branch
      %16 = sbr.rel target = $region3
    $region8: #{tpu_custom_call.1} parent=1 // loop_exit
      _
    %403 = vsyncpa [#allocation3], 1
    %s404 = scalar_lea.sflag [#allocation3], 1
    %405 = vsyncpa %s404, 1
    %406 = vsyncpa [#allocation6], 1
    %s407 = scalar_lea.sflag [#allocation6], 1
    %408 = vsyncpa %s407, 1
    %409 = vsyncpa [#allocation4], 1
    %s410 = scalar_lea.sflag [#allocation4], 1
    %411 = vsyncpa %s410, 1

</llo_original>
